<compile_context>
chip_gen: v5e
topology: v5e:2x2
jax: 0.10.0
libtpu: 0.0.40
codegen_flags: <defaults>
</compile_context>

<pallas_src>
import math
import functools

import jax
import jax.numpy as jnp
from jax.experimental import pallas as pl
from jax.experimental.pallas import tpu as pltpu


def _round_up(x, m):
    return ((x + m - 1) // m) * m


# -----------------------------------------------------------------------------
# One-time feature probe: does this JAX/Mosaic build accept pl.Buffered(1)
# (single-buffered grid-invariant blocks)?  The real kernel build is NOT wrapped
# in try/except, so genuine errors (VMEM overflow, lowering bugs) are never masked.
# -----------------------------------------------------------------------------
def _probe_kernel(x_ref, o_ref):
    o_ref[...] = x_ref[...] + 1.0


@functools.lru_cache(maxsize=1)
def _single_buffer_supported() -> bool:
    if not hasattr(pl, "Buffered"):
        return False
    try:
        spec = pl.BlockSpec((8, 128), lambda i: (0, 0), pipeline_mode=pl.Buffered(1))
    except TypeError:
        return False
    try:
        fn = pl.pallas_call(
            _probe_kernel,
            out_shape=jax.ShapeDtypeStruct((8, 128), jnp.float32),
            grid=(2,),
            in_specs=[spec],
            out_specs=pl.BlockSpec((8, 128), lambda i: (0, 0)),
        )
        jax.block_until_ready(fn(jnp.zeros((8, 128), jnp.float32)))
        return True
    except Exception:  # probe only; never wraps the real kernel
        return False


# -----------------------------------------------------------------------------
# Kernel
# -----------------------------------------------------------------------------
def _gdc_kernel(x_ref, adjT_ref, w_ref, b_ref, o_ref, *, k: int):
    # x_ref   : (bblk, 1, Np)   node features, lane-dense along (padded) N
    # adjT_ref: (Np, Np)        transposed diffusion matrix DW^T (grid-invariant)
    # w_ref   : (F, 1)          weight column (in_features == 1 per the bmm contract)
    # b_ref   : (F, 1)          bias column
    # o_ref   : (bblk, F, Np)   transposed output block (lane-dense, unmasked stores)
    bblk = x_ref.shape[0]
    np_ = adjT_ref.shape[0]
    f = w_ref.shape[0]
    cd = adjT_ref.dtype                            # MXU operand dtype (bf16 or f32)

    x = x_ref[...].astype(jnp.float32)             # (bblk, 1, Np)
    w = w_ref[...].astype(jnp.float32)             # (F, 1)
    # support^T[b, f, n] = w[f] * x[b, n]; merge (b, f) into MXU rows.
    support_t = (w[None, :, :] * x).reshape(bblk * f, np_)   # (bblk*F, Np), f32

    adj_t = adjT_ref[...]                          # (Np, Np), compute dtype
    out = support_t                                # identity (i = 0) term, f32 accumulator
    tmp = support_t
    for _ in range(k):                             # Horner: tmp @ adj^T == (adj @ tmp)^T
        tmp = jnp.dot(tmp.astype(cd), adj_t, preferred_element_type=jnp.float32)
        out = out + tmp

    out = out.reshape(bblk, f, np_) + b_ref[...].astype(jnp.float32)[None, :, :]
    o_ref[...] = out.astype(o_ref.dtype)


# -----------------------------------------------------------------------------
# Call builder helpers
# -----------------------------------------------------------------------------
def _auto_bblk(batch, f, target_rows=256, min_grid=2):
    """Largest divisor of `batch` with bblk*F <= target_rows (fill the 256-wide MXU
    on v6e/v7x; two clean 128-row passes on v5e), keeping >= min_grid grid steps so
    the 'parallel' batch axis can feed both v7x TensorCores."""
    best = 1
    for cand in range(1, batch + 1):
        if batch % cand != 0:
            continue
        if cand * f > target_rows:
            continue
        if batch >= min_grid and batch // cand < min_grid:
            continue
        best = max(best, cand)
    return best


def _vmem_limit_bytes(np_, bblk, f, adj_itemsize, single_buffered):
    adj_bufs = 1 if single_buffered else 2
    need = (adj_bufs * adj_itemsize * np_ * np_      # resident adj^T
            + 2 * bblk * np_ * 4                     # double-buffered x blocks
            + 2 * bblk * f * np_ * 4                 # double-buffered out blocks
            + 2 * bblk * f * np_ * 4                 # f32 out / tmp intermediates
            + 4 * f * 4)                             # weight / bias columns
    need = int(need * 1.5) + (8 << 20)               # compiler-scratch headroom
    try:
        phys = int(getattr(pltpu.get_tpu_info(), "vmem_capacity_bytes", 64 << 20))
    except Exception:
        phys = 64 << 20                              # conservative (v7x per-TC)
    return max(32 << 20, min(need, int(phys * 0.8)))


def _build_gdc_call(B, Np, F, bblk, k, compute_dtype):
    kernel = functools.partial(_gdc_kernel, k=k)
    single_buffered = _single_buffer_supported()

    def invariant_spec(shape):
        # adj^T / weight / bias never change across grid steps: keep ONE VMEM copy.
        idx_map = lambda b, _n=len(shape): (0,) * _n
        if single_buffered:
            return pl.BlockSpec(shape, idx_map, pipeline_mode=pl.Buffered(1))
        return pl.BlockSpec(shape, idx_map)

    adj_itemsize = jnp.dtype(compute_dtype).itemsize
    cost = pl.CostEstimate(
        flops=2 * B * k * Np * Np * F,               # k Horner matmuls (F,Np)x(Np,Np) per b
        transcendentals=0,
        bytes_accessed=adj_itemsize * Np * Np + 4 * B * Np + 4 * 2 * F + 4 * B * F * Np,
    )

    return pl.pallas_call(
        kernel,
        out_shape=jax.ShapeDtypeStruct((B, F, Np), jnp.float32),
        grid_spec=pltpu.PrefetchScalarGridSpec(
            num_scalar_prefetch=0,
            grid=(B // bblk,),
            in_specs=[
                pl.BlockSpec((bblk, 1, Np), lambda b: (b, 0, 0)),   # per-batch features
                invariant_spec((Np, Np)),                           # adj^T (shared)
                invariant_spec((F, 1)),                             # weight column
                invariant_spec((F, 1)),                             # bias column
            ],
            out_specs=pl.BlockSpec((bblk, F, Np), lambda b: (b, 0, 0)),
        ),
        compiler_params=pltpu.CompilerParams(
            dimension_semantics=("parallel",),
            vmem_limit_bytes=_vmem_limit_bytes(Np, bblk, F, adj_itemsize, single_buffered),
        ),
        cost_estimate=cost,
    )


# -----------------------------------------------------------------------------
# Public wrapper
# -----------------------------------------------------------------------------
def prepare_adj_t(adj, compute_dtype=jnp.bfloat16):
    """One-time preprocessing of the diffusion matrix: transpose (so the kernel's Horner
    step is a lane-dense `tmp @ adj^T`), cast to the MXU compute dtype and zero-pad N to
    a multiple of 128.  Cache this at model setup — recomputing it every forward is a
    full N^2 HBM relayout + cast in a separate XLA op."""
    n = adj.shape[0]
    np_ = _round_up(max(n, 128), 128)
    adj_t = jnp.transpose(adj).astype(compute_dtype)
    if np_ != n:
        adj_t = jnp.pad(adj_t, ((0, np_ - n), (0, np_ - n)))
    return adj_t


def graph_diffusion_convolution(inputs, adj, weight, bias=None, k=2, *,
                                bblk=None, compute_dtype=jnp.bfloat16,
                                adj_t=None, out_layout="bnf"):
    """inputs (B, N), adj (N, N), weight (1, F), bias (F,) -> (B, N, F) (or (B, N) if F==1).

    out_layout="bnf": PyTorch layout (default, includes the F==1 squeeze).
    out_layout="bfn": kernel-native (B, F, N) layout — skips the output transpose.
    Pass a cached `adj_t = prepare_adj_t(adj, dtype)` to skip the per-call adj prep."""
    B, N = inputs.shape
    in_features, F = weight.shape
    if in_features != 1:
        raise ValueError("the bmm in the PyTorch forward requires in_features == 1")
    if out_layout not in ("bnf", "bfn"):
        raise ValueError("out_layout must be 'bnf' or 'bfn'")

    if adj_t is None:
        adj_t = prepare_adj_t(adj, compute_dtype)
    Np = adj_t.shape[0]

    if bblk is None:
        bblk = _auto_bblk(B, F)
    if B % bblk != 0:
        raise ValueError("bblk must divide the batch size")

    x3 = inputs.reshape(B, 1, N).astype(jnp.float32)            # lane-dense along N
    if Np != N:
        x3 = jnp.pad(x3, ((0, 0), (0, 0), (0, Np - N)))          # zero lane-padding
    if bias is None:
        bias = jnp.zeros((F,), jnp.float32)
    w_col = jnp.transpose(weight.astype(jnp.float32))            # (F, 1)
    b_col = bias.astype(jnp.float32).reshape(F, 1)               # (F, 1)

    out_t = _build_gdc_call(B, Np, F, bblk, k, adj_t.dtype)(x3, adj_t, w_col, b_col)
    out_t = out_t[:, :, :N]                                      # drop lane padding

    if out_layout == "bfn":
        return out_t                                             # (B, F, N), no transpose
    out = jnp.transpose(out_t, (0, 2, 1))                        # PyTorch (B, N, F)
    if F == 1:
        out = out.reshape(B, N)                                  # output.squeeze(dim=2)
    return out


# -----------------------------------------------------------------------------
# Pure-JAX reference (mirrors the PyTorch adj-power chain)
# -----------------------------------------------------------------------------
def _reference(inputs, adj, weight, bias, k=2):
    B, N = inputs.shape
    F = weight.shape[1]
    support = inputs[:, :, None] * weight[0][None, None, :]     # (B, N, F)
    output = support
    adj_cur = adj
    for _ in range(k):
        output = output + jnp.einsum("nm,bmf->bnf", adj_cur, support)
        adj_cur = adj_cur @ adj
    output = output + bias[None, None, :]
    if F == 1:
        output = output.reshape(B, N)
    return output


if __name__ == "__main__":
    B, N = 2, 16
    in_features, out_features, k = 1, 32, 2      # in_features must be 1 (bmm contract)

    key = jax.random.PRNGKey(0)
    k_x, k_adj, k_w, k_b = jax.random.split(key, 4)

    # reset_parameters(): uniform(-stdv, stdv), stdv = 1/sqrt(in_features * k)
    stdv = 1.0 / math.sqrt(in_features * k)
    weight = jax.random.uniform(k_w, (in_features, out_features), jnp.float32,
                                minval=-stdv, maxval=stdv)
    bias = jax.random.uniform(k_b, (out_features,), jnp.float32,
                              minval=-stdv, maxval=stdv)

    inputs = jax.random.normal(k_x, (B, N), jnp.float32)
    adj_raw = jax.random.uniform(k_adj, (N, N), jnp.float32)
    adj = adj_raw / jnp.sum(adj_raw, axis=1, keepdims=True)     # row-stochastic DW

    ref = _reference(inputs, adj, weight, bias, k=k)

    # Exact (f32 MXU) path: tight tolerance.
    out_f32 = graph_diffusion_convolution(inputs, adj, weight, bias, k=k,
                                          compute_dtype=jnp.float32)
    out_f32 = jax.block_until_ready(out_f32)
    assert out_f32.shape == ref.shape, (out_f32.shape, ref.shape)
    if not bool(jnp.allclose(out_f32, ref, rtol=1e-5, atol=1e-5)):
        raise AssertionError("Pallas kernel (f32) does not match reference")

    # Default path: bf16 adj^T on the MXU, f32 accumulation, cached adj^T (prep hoisted
    # out of the forward, as it would be in a real model).
    adj_t_cached = prepare_adj_t(adj)                            # bf16 + lane-padded, once
    out_bf16 = graph_diffusion_convolution(inputs, adj, weight, bias, k=k,
                                           adj_t=adj_t_cached)
    out_bf16 = jax.block_until_ready(out_bf16)
    if not bool(jnp.allclose(out_bf16, ref, rtol=5e-2, atol=5e-2)):
        raise AssertionError("Pallas kernel (bf16) outside bf16 tolerance")

    # Kernel-native (B, F, N) output layout (skips the wrapper transpose).
    out_bfn = graph_diffusion_convolution(inputs, adj, weight, bias, k=k,
                                          adj_t=adj_t_cached, out_layout="bfn")
    out_bfn = jax.block_until_ready(out_bfn)
    if not bool(jnp.allclose(jnp.transpose(out_bfn, (0, 2, 1)), out_bf16,
                             rtol=1e-6, atol=1e-6)):
        raise AssertionError("bfn layout does not match bnf layout")

    print("KERNEL_OK")
</pallas_src>

<mosaic_0001>
module attributes {stable_mosaic.version = 11 : i64} {
  func.func @_probe_kernel(%arg0: i32, %arg1: memref<8x128xf32, #tpu.memory_space<vmem>>, %arg2: memref<8x128xf32, #tpu.memory_space<vmem>>) attributes {dimension_semantics = [#tpu.dimension_semantics<arbitrary>], iteration_bounds = array<i64: 2>, scalar_prefetch = 0 : i64, scratch_operands = 0 : i64, tpu.core_type = #tpu.core_type<tc>, window_params = [{pipeline_mode = #tpu.pipeline_mode<synchronous>, transform_indices = @transform_0, window_bounds = array<i64: 8, 128>}, {pipeline_mode = #tpu.pipeline_mode<synchronous>, transform_indices = @transform_1, window_bounds = array<i64: 8, 128>}]} {
    %c0 = arith.constant 0 : index
    %c0_0 = arith.constant 0 : index
    %0 = vector.load %arg1[%c0, %c0_0] : memref<8x128xf32, #tpu.memory_space<vmem>>, vector<8x128xf32>
    %cst = arith.constant 1.000000e+00 : f32
    %1 = vector.broadcast %cst : f32 to vector<8x128xf32>
    %2 = arith.addf %0, %1 : vector<8x128xf32>
    %c0_1 = arith.constant 0 : index
    %c0_2 = arith.constant 0 : index
    %3 = vector.load %arg2[%c0_1, %c0_2] : memref<8x128xf32, #tpu.memory_space<vmem>>, vector<8x128xf32>
    tpu.vector_store %arg2[%c0_1, %c0_2], %2 {strides = array<i32>} : memref<8x128xf32, #tpu.memory_space<vmem>>, vector<8x128xf32>,
    return
  }
  func.func @transform_0(%arg0: i32) -> (i32, i32) {
    %c0_i32 = arith.constant 0 : i32
    %c0_i32_0 = arith.constant 0 : i32
    %c0_i32_1 = arith.constant 0 : i32
    return %c0_i32, %c0_i32_0 : i32, i32
  }
  func.func @transform_1(%arg0: i32) -> (i32, i32) {
    %c0_i32 = arith.constant 0 : i32
    %c0_i32_0 = arith.constant 0 : i32
    %c0_i32_1 = arith.constant 0 : i32
    return %c0_i32, %c0_i32_0 : i32, i32
  }
}

module attributes {stable_mosaic.version = 11 : i64} {
  func.func @_gdc_kernel(%arg0: i32, %arg1: memref<1x1x128xf32, #tpu.memory_space<vmem>>, %arg2: memref<128x128xf32, #tpu.memory_space<vmem>>, %arg3: memref<32x1xf32, #tpu.memory_space<vmem>>, %arg4: memref<32x1xf32, #tpu.memory_space<vmem>>, %arg5: memref<1x32x128xf32, #tpu.memory_space<vmem>>) attributes {dimension_semantics = [#tpu.dimension_semantics<parallel>], iteration_bounds = array<i64: 2>, scalar_prefetch = 0 : i64, scratch_operands = 0 : i64, tpu.core_type = #tpu.core_type<tc>, window_params = [{transform_indices = @transform_0, window_bounds = array<i64: 1, 1, 128>}, {pipeline_mode = #tpu.pipeline_mode<synchronous>, transform_indices = @transform_1, window_bounds = array<i64: 128, 128>}, {pipeline_mode = #tpu.pipeline_mode<synchronous>, transform_indices = @transform_2, window_bounds = array<i64: 32, 1>}, {pipeline_mode = #tpu.pipeline_mode<synchronous>, transform_indices = @transform_3, window_bounds = array<i64: 32, 1>}, {transform_indices = @transform_4, window_bounds = array<i64: 1, 32, 128>}]} {
    %c0 = arith.constant 0 : index
    %c0_0 = arith.constant 0 : index
    %c0_1 = arith.constant 0 : index
    %0 = vector.load %arg1[%c0, %c0_0, %c0_1] : memref<1x1x128xf32, #tpu.memory_space<vmem>>, vector<1x1x128xf32>
    %c0_2 = arith.constant 0 : index
    %c0_3 = arith.constant 0 : index
    %1 = vector.load %arg3[%c0_2, %c0_3] : memref<32x1xf32, #tpu.memory_space<vmem>>, vector<32x1xf32>
    %2 = vector.shape_cast %1 : vector<32x1xf32> to vector<1x32x1xf32>
    %3 = vector.broadcast %2 : vector<1x32x1xf32> to vector<1x32x128xf32>
    %4 = vector.broadcast %0 : vector<1x1x128xf32> to vector<1x32x128xf32>
    %5 = arith.mulf %3, %4 : vector<1x32x128xf32>
    %6 = vector.shape_cast %5 : vector<1x32x128xf32> to vector<32x128xf32>
    %c0_4 = arith.constant 0 : index
    %c0_5 = arith.constant 0 : index
    %7 = vector.load %arg2[%c0_4, %c0_5] : memref<128x128xf32, #tpu.memory_space<vmem>>, vector<128x128xf32>
    %cst = arith.constant dense<0.000000e+00> : vector<32x128xf32>
    %8 = tpu.matmul %6, %7, %cst {dimension_numbers = #tpu.dot_dimension_numbers<[1], [0], [0], [1], [0, 0, 1, 1], [], []>} : vector<32x128xf32>, vector<128x128xf32>, vector<32x128xf32> -> vector<32x128xf32>
    %9 = arith.addf %6, %8 : vector<32x128xf32>
    %cst_6 = arith.constant dense<0.000000e+00> : vector<32x128xf32>
    %10 = tpu.matmul %8, %7, %cst_6 {dimension_numbers = #tpu.dot_dimension_numbers<[1], [0], [0], [1], [0, 0, 1, 1], [], []>} : vector<32x128xf32>, vector<128x128xf32>, vector<32x128xf32> -> vector<32x128xf32>
    %11 = arith.addf %9, %10 : vector<32x128xf32>
    %12 = vector.shape_cast %11 : vector<32x128xf32> to vector<1x32x128xf32>
    %c0_7 = arith.constant 0 : index
    %c0_8 = arith.constant 0 : index
    %13 = vector.load %arg4[%c0_7, %c0_8] : memref<32x1xf32, #tpu.memory_space<vmem>>, vector<32x1xf32>
    %14 = vector.shape_cast %13 : vector<32x1xf32> to vector<1x32x1xf32>
    %15 = vector.broadcast %14 : vector<1x32x1xf32> to vector<1x32x128xf32>
    %16 = arith.addf %12, %15 : vector<1x32x128xf32>
    %c0_9 = arith.constant 0 : index
    %c0_10 = arith.constant 0 : index
    %c0_11 = arith.constant 0 : index
    %17 = vector.load %arg5[%c0_9, %c0_10, %c0_11] : memref<1x32x128xf32, #tpu.memory_space<vmem>>, vector<1x32x128xf32>
    tpu.vector_store %arg5[%c0_9, %c0_10, %c0_11], %16 {strides = array<i32>} : memref<1x32x128xf32, #tpu.memory_space<vmem>>, vector<1x32x128xf32>,
    return
  }
  func.func @transform_0(%arg0: i32) -> (i32, i32, i32) {
    %c0_i32 = arith.constant 0 : i32
    %c0_i32_0 = arith.constant 0 : i32
    %c0_i32_1 = arith.constant 0 : i32
    return %arg0, %c0_i32, %c0_i32_0 : i32, i32, i32
  }
  func.func @transform_1(%arg0: i32) -> (i32, i32) {
    %c0_i32 = arith.constant 0 : i32
    %c0_i32_0 = arith.constant 0 : i32
    %c0_i32_1 = arith.constant 0 : i32
    return %c0_i32, %c0_i32_0 : i32, i32
  }
  func.func @transform_2(%arg0: i32) -> (i32, i32) {
    %c0_i32 = arith.constant 0 : i32
    %c0_i32_0 = arith.constant 0 : i32
    %c0_i32_1 = arith.constant 0 : i32
    return %c0_i32, %c0_i32_0 : i32, i32
  }
  func.func @transform_3(%arg0: i32) -> (i32, i32) {
    %c0_i32 = arith.constant 0 : i32
    %c0_i32_0 = arith.constant 0 : i32
    %c0_i32_1 = arith.constant 0 : i32
    return %c0_i32, %c0_i32_0 : i32, i32
  }
  func.func @transform_4(%arg0: i32) -> (i32, i32, i32) {
    %c0_i32 = arith.constant 0 : i32
    %c0_i32_0 = arith.constant 0 : i32
    %c0_i32_1 = arith.constant 0 : i32
    return %arg0, %c0_i32, %c0_i32_0 : i32, i32, i32
  }
}

</mosaic_0001>

<llo_original>
// kernel: tpu_custom_call.1
$region0: #{tpu_custom_call.1}
  #allocation0 [shape = 'u32[]', space=smem, size = 0x4, offset = 0x4, fixed_abs, tag = 'smem constant byte address 0x4 - core index']
  #allocation1 [shape = 'u32[72,128]{1,0:T(1,128)}', space=vmem, size = 0x9000, scoped, tag = 'internal scratch']
  %s0 = inlined_call_operand.hbm [shape: f32[8,128], index: 0, kind: input, shape index: {}]
  %s1 = inlined_call_operand.hbm [shape: f32[8,128], index: 1, kind: output, shape index: {}]
  %s2 = sld [smem:[#allocation0]]
  $region41: #{tpu_custom_call.1} parent=0
    _
  %s4 = ssub.s32 1, %s2
  %s5 = scalar_select 0, %s4, %s2
  $region1: #{tpu_custom_call.1} parent=0
    #allocation2 [shape = 'u8[4096]{0}', space=vmem, size = 0x1000, scoped, tag = 'input window, operand 0, single buffered']
    #allocation3 [shape = 's32[2]{0}', space=sflag, size = 0x8, scoped, tag = 'scoped memory for tpu_custom_call.1']
    #allocation4 [shape = 's32[2]{0}', space=sflag, size = 0x8, scoped, tag = 'scoped memory for tpu_custom_call.1']
    #allocation5 [shape = 'u8[4096]{0}', space=vmem, size = 0x1000, scoped, tag = 'output window, operand 0, single buffered']
    %6 = vsyncpa [#allocation3], 0
    %7 = vsyncpa [#allocation4], 0
    loop: start=0, step=1, limit=4
    $region2: #{tpu_custom_call.1} parent=1 // loop_pre_header
      _
    $region3: #{tpu_custom_call.1} parent=1 // loop_header
      %s9 = sphi 0, %s13
      %p10 = scmp.ge.s32.totalorder %s9, 4
      %s17 = sphi 0, %s17
      %s19 = sphi 0, %s17
      %s20 = sphi 0, %s19
      %s34 = sphi 0, %s20
      %s38 = sphi 0, %s38
      %s40 = sphi 0, %s38
      %s41 = sphi 0, %s40
      %s55 = sphi 0, %s41
    $region4: #{tpu_custom_call.1} parent=1 // loop_header_branch
      %12 = sbr.rel (%p10) target = $region8
    $region5: #{tpu_custom_call.1} parent=1 // loop_body
      %s14 = ssub.s32 %s9, 1
      %s15 = ssub.s32 %s9, 2
      %s16 = sadd.s32 %s9, 1
      %s18 = sadd.s32 %s17, 1
      %p21 = scmp.eq.s32.totalorder %s9, 1
      %p22 = scmp.ne.s32.totalorder %s17, %s19
      %p23 = scmp.eq.s32.totalorder %s9, 0
      %p24 = por %p22, %p23
      %p25 = scmp.ne.s32.totalorder %s17, %s19
      %p26 = scmp.eq.s32.totalorder %s14, 1
      %p27 = por %p25, %p26
      %p28 = scmp.ne.s32.totalorder %s19, %s20
      %p29 = scmp.eq.s32.totalorder %s14, 0
      %p30 = por %p28, %p29
      %p31 = scmp.ne.s32.totalorder %s19, %s20
      %p32 = scmp.eq.s32.totalorder %s15, 1
      %p33 = por %p31, %p32
      %p35 = scmp.ne.s32.totalorder %s20, %s34
      %p36 = scmp.eq.s32.totalorder %s15, 0
      %p37 = por %p35, %p36
      %s39 = sadd.s32 %s38, 1
      %p42 = scmp.eq.s32.totalorder %s9, 1
      %p43 = scmp.ne.s32.totalorder %s38, %s40
      %p44 = scmp.eq.s32.totalorder %s9, 0
      %p45 = por %p43, %p44
      %p46 = scmp.ne.s32.totalorder %s38, %s40
      %p47 = scmp.eq.s32.totalorder %s14, 1
      %p48 = por %p46, %p47
      %p49 = scmp.ne.s32.totalorder %s40, %s41
      %p50 = scmp.eq.s32.totalorder %s14, 0
      %p51 = por %p49, %p50
      %p52 = scmp.ne.s32.totalorder %s40, %s41
      %p53 = scmp.eq.s32.totalorder %s15, 1
      %p54 = por %p52, %p53
      %p56 = scmp.ne.s32.totalorder %s41, %s55
      %p57 = scmp.eq.s32.totalorder %s15, 0
      %p58 = por %p56, %p57
      %p59 = scmp.le.s32.totalorder 1, %s9
      %p60 = scmp.lt.s32.totalorder %s9, 3
      %p61 = pnand %p59, %p60
      %p62 = pneg %p61
      // Predicated region
      $region9: #{tpu_custom_call.1} parent=5 // pred_check
        _
      $region10: #{tpu_custom_call.1} parent=5 // pred_check_branch
        %64 = sbr.rel (%p61) target = $region12
      $region11: #{tpu_custom_call.1} parent=5 // pred_region
        %s65 = ssub.s32 %s9, 1
        // Predicated region
        $region13: #{tpu_custom_call.1} parent=11 // pred_check
          %p66 = pneg %p30
        $region14: #{tpu_custom_call.1} parent=11 // pred_check_branch
          %68 = sbr.rel (%p66) target = $region16
        $region15: #{tpu_custom_call.1} parent=11 // pred_region
          %70 = vsyncadd [#allocation3], 0
          %s72 = sshll.u32 %s0, 4
          %s73 = int_to_ptr.hbm [resolvable:$true] %s72
          %s74 = sshll.u32 [#allocation2], 4
          %s75 = int_to_ptr.vmem [resolvable:$true] %s74
          %77 = dma.hbm_to_vmem [thread:$0]  %s73, 128, %s75, [#allocation3]
        $region16: #{tpu_custom_call.1} parent=11 // pred_fallthru
          _
      $region12: #{tpu_custom_call.1} parent=5 // pred_fallthru
        _
      %p78 = scmp.lt.s32.totalorder %s9, 2
      // Predicated region
      $region17: #{tpu_custom_call.1} parent=5 // pred_check
        %p79 = pneg %p78
      $region18: #{tpu_custom_call.1} parent=5 // pred_check_branch
        %81 = sbr.rel (%p79) target = $region20
      $region19: #{tpu_custom_call.1} parent=5 // pred_region
        _
      $region20: #{tpu_custom_call.1} parent=5 // pred_fallthru
        _
      %p82 = scmp.le.s32.totalorder 1, %s9
      %p83 = scmp.lt.s32.totalorder %s9, 3
      %p84 = pnand %p82, %p83
      %p85 = pneg %p84
      // Predicated region
      $region21: #{tpu_custom_call.1} parent=5 // pred_check
        _
      $region22: #{tpu_custom_call.1} parent=5 // pred_check_branch
        %87 = sbr.rel (%p84) target = $region24
      $region23: #{tpu_custom_call.1} parent=5 // pred_region
        %s88 = ssub.s32 %s9, 1
        // Predicated region
        $region25: #{tpu_custom_call.1} parent=23 // pred_check
          %p89 = pneg %p30
        $region26: #{tpu_custom_call.1} parent=23 // pred_check_branch
          %91 = sbr.rel (%p89) target = $region28
        $region27: #{tpu_custom_call.1} parent=23 // pred_region
          %93 = dma.done [#allocation3], 128
        $region28: #{tpu_custom_call.1} parent=23 // pred_fallthru
          _
        %p94 = pneg %p30
        %p95 = pneg %p27
        %p96 = pneg %p51
        %p97 = pneg %p48
        %v98 = vld [vmem:[#allocation2] sm:$0xff]
        %v99 = vadd.f32 %v98, 1.0
        %100 = vst [vmem:[#allocation5] sm:$0xff] %v99
        // Predicated region
        $region29: #{tpu_custom_call.1} parent=23 // pred_check
          %p101 = pneg %p48
        $region30: #{tpu_custom_call.1} parent=23 // pred_check_branch
          %103 = sbr.rel (%p101) target = $region32
        $region31: #{tpu_custom_call.1} parent=23 // pred_region
          %105 = vsyncadd [#allocation4], 0
          %s107 = sshll.u32 [#allocation5], 4
          %s108 = int_to_ptr.vmem [resolvable:$true] %s107
          %s109 = sshll.u32 %s1, 4
          %s110 = int_to_ptr.hbm [resolvable:$true] %s109
          %112 = dma.vmem_to_hbm [thread:$0]  %s108, 128, %s110, [#allocation4]
        $region32: #{tpu_custom_call.1} parent=23 // pred_fallthru
          _
        // Predicated region
        $region33: #{tpu_custom_call.1} parent=23 // pred_check
          %p113 = pneg %p48
        $region34: #{tpu_custom_call.1} parent=23 // pred_check_branch
          %115 = sbr.rel (%p113) target = $region36
        $region35: #{tpu_custom_call.1} parent=23 // pred_region
          %117 = dma.done [#allocation4], 128
        $region36: #{tpu_custom_call.1} parent=23 // pred_fallthru
          _
      $region24: #{tpu_custom_call.1} parent=5 // pred_fallthru
        _
      %p118 = scmp.le.s32.totalorder 2, %s9
      // Predicated region
      $region37: #{tpu_custom_call.1} parent=5 // pred_check
        %p119 = pneg %p118
      $region38: #{tpu_custom_call.1} parent=5 // pred_check_branch
        %121 = sbr.rel (%p119) target = $region40
      $region39: #{tpu_custom_call.1} parent=5 // pred_region
        %s122 = ssub.s32 %s9, 2
      $region40: #{tpu_custom_call.1} parent=5 // pred_fallthru
        _
    $region6: #{tpu_custom_call.1} parent=1 // loop_footer
      %s13 = sadd.s32 1, %s9
    $region7: #{tpu_custom_call.1} parent=1 // loop_footer_branch
      %8 = sbr.rel target = $region3
    $region8: #{tpu_custom_call.1} parent=1 // loop_exit
      _
    %123 = vsyncpa [#allocation3], 1
    %s124 = scalar_lea.sflag [#allocation3], 1
    %125 = vsyncpa %s124, 1
    %126 = vsyncpa [#allocation4], 1
    %s127 = scalar_lea.sflag [#allocation4], 1
    %128 = vsyncpa %s127, 1

// kernel: tpu_custom_call.1
$region0: #{tpu_custom_call.1}
  #allocation0 [shape = 'u32[]', space=smem, size = 0x4, offset = 0x4, fixed_abs, tag = 'smem constant byte address 0x4 - core index']
  #allocation1 [shape = 'u32[72,128]{1,0:T(1,128)}', space=vmem, size = 0x9000, scoped, tag = 'internal scratch']
  %s0 = inlined_call_operand.vmem [shape: f32[2,1,128], index: 0, kind: input, shape index: {}]
  %s1 = inlined_call_operand.hbm [shape: f32[128,128], index: 1, kind: input, shape index: {}]
  %s2 = inlined_call_operand.vmem [shape: f32[32,1], index: 2, kind: input, shape index: {}]
  %s3 = inlined_call_operand.vmem [shape: f32[32,1], index: 3, kind: input, shape index: {}]
  %s4 = inlined_call_operand.hbm [shape: f32[2,32,128], index: 4, kind: output, shape index: {}]
  %s5 = sld [smem:[#allocation0]]
  $region53: #{tpu_custom_call.1} parent=0
    _
  %s7 = ssub.s32 1, %s5
  %s8 = scalar_select 0, %s7, %s5
  $region1: #{tpu_custom_call.1} parent=0
    #allocation2 [shape = 'u8[65536]{0}', space=vmem, size = 0x10000, scoped, tag = 'input window, operand 1, single buffered']
    #allocation3 [shape = 's32[2]{0}', space=sflag, size = 0x8, scoped, tag = 'scoped memory for tpu_custom_call.1']
    #allocation4 [shape = 's32[2]{0}', space=sflag, size = 0x8, scoped, tag = 'scoped memory for tpu_custom_call.1']
    #allocation5 [shape = 'u8[32768]{0}', space=vmem, size = 0x8000, scoped, tag = 'output window, operand 0']
    %9 = vsyncpa [#allocation3], 0
    %10 = vsyncpa [#allocation4], 0
    %s11 = scalar_lea.sflag [#allocation4], 1
    %12 = vsyncpa %s11, 0
    loop: start=0, step=1, limit=4
    $region2: #{tpu_custom_call.1} parent=1 // loop_pre_header
      _
    $region3: #{tpu_custom_call.1} parent=1 // loop_header
      %s14 = sphi 0, %s18
      %p15 = scmp.ge.s32.totalorder %s14, 4
      %s24 = sphi 0, %s26
      %s27 = sphi 0, %s24
      %s28 = sphi 0, %s27
      %s44 = sphi 0, %s28
      %s48 = sphi 0, %s48
      %s50 = sphi 0, %s48
      %s51 = sphi 0, %s50
      %s65 = sphi 0, %s51
      %s69 = sphi 0, %s69
      %s71 = sphi 0, %s69
      %s72 = sphi 0, %s71
      %s86 = sphi 0, %s72
      %s90 = sphi 0, %s90
      %s92 = sphi 0, %s90
      %s93 = sphi 0, %s92
      %s107 = sphi 0, %s93
      %s113 = sphi 0, %s115
      %s116 = sphi 0, %s113
      %s117 = sphi 0, %s116
      %s133 = sphi 0, %s117
    $region4: #{tpu_custom_call.1} parent=1 // loop_header_branch
      %17 = sbr.rel (%p15) target = $region8
    $region5: #{tpu_custom_call.1} parent=1 // loop_body
      %s19 = ssub.s32 %s14, 1
      %s20 = ssub.s32 %s14, 2
      %s21 = sadd.s32 %s14, 1
      %s22 = ssub.s32 %s14, %s21
      %p23 = scmp.eq.s32.totalorder %s22, 0
      %s25 = sadd.s32 %s24, 1
      %s26 = scalar_select %p23, %s24, %s25
      %p29 = pneg %p23
      %p30 = scmp.eq.s32.totalorder %s14, 1
      %p31 = por %p29, %p30
      %p32 = scmp.ne.s32.totalorder %s24, %s27
      %p33 = scmp.eq.s32.totalorder %s14, 0
      %p34 = por %p32, %p33
      %p35 = scmp.ne.s32.totalorder %s24, %s27
      %p36 = scmp.eq.s32.totalorder %s19, 1
      %p37 = por %p35, %p36
      %p38 = scmp.ne.s32.totalorder %s27, %s28
      %p39 = scmp.eq.s32.totalorder %s19, 0
      %p40 = por %p38, %p39
      %p41 = scmp.ne.s32.totalorder %s27, %s28
      %p42 = scmp.eq.s32.totalorder %s20, 1
      %p43 = por %p41, %p42
      %p45 = scmp.ne.s32.totalorder %s28, %s44
      %p46 = scmp.eq.s32.totalorder %s20, 0
      %p47 = por %p45, %p46
      %s49 = sadd.s32 %s48, 1
      %p52 = scmp.eq.s32.totalorder %s14, 1
      %p53 = scmp.ne.s32.totalorder %s48, %s50
      %p54 = scmp.eq.s32.totalorder %s14, 0
      %p55 = por %p53, %p54
      %p56 = scmp.ne.s32.totalorder %s48, %s50
      %p57 = scmp.eq.s32.totalorder %s19, 1
      %p58 = por %p56, %p57
      %p59 = scmp.ne.s32.totalorder %s50, %s51
      %p60 = scmp.eq.s32.totalorder %s19, 0
      %p61 = por %p59, %p60
      %p62 = scmp.ne.s32.totalorder %s50, %s51
      %p63 = scmp.eq.s32.totalorder %s20, 1
      %p64 = por %p62, %p63
      %p66 = scmp.ne.s32.totalorder %s51, %s65
      %p67 = scmp.eq.s32.totalorder %s20, 0
      %p68 = por %p66, %p67
      %s70 = sadd.s32 %s69, 1
      %p73 = scmp.eq.s32.totalorder %s14, 1
      %p74 = scmp.ne.s32.totalorder %s69, %s71
      %p75 = scmp.eq.s32.totalorder %s14, 0
      %p76 = por %p74, %p75
      %p77 = scmp.ne.s32.totalorder %s69, %s71
      %p78 = scmp.eq.s32.totalorder %s19, 1
      %p79 = por %p77, %p78
      %p80 = scmp.ne.s32.totalorder %s71, %s72
      %p81 = scmp.eq.s32.totalorder %s19, 0
      %p82 = por %p80, %p81
      %p83 = scmp.ne.s32.totalorder %s71, %s72
      %p84 = scmp.eq.s32.totalorder %s20, 1
      %p85 = por %p83, %p84
      %p87 = scmp.ne.s32.totalorder %s72, %s86
      %p88 = scmp.eq.s32.totalorder %s20, 0
      %p89 = por %p87, %p88
      %s91 = sadd.s32 %s90, 1
      %p94 = scmp.eq.s32.totalorder %s14, 1
      %p95 = scmp.ne.s32.totalorder %s90, %s92
      %p96 = scmp.eq.s32.totalorder %s14, 0
      %p97 = por %p95, %p96
      %p98 = scmp.ne.s32.totalorder %s90, %s92
      %p99 = scmp.eq.s32.totalorder %s19, 1
      %p100 = por %p98, %p99
      %p101 = scmp.ne.s32.totalorder %s92, %s93
      %p102 = scmp.eq.s32.totalorder %s19, 0
      %p103 = por %p101, %p102
      %p104 = scmp.ne.s32.totalorder %s92, %s93
      %p105 = scmp.eq.s32.totalorder %s20, 1
      %p106 = por %p104, %p105
      %p108 = scmp.ne.s32.totalorder %s93, %s107
      %p109 = scmp.eq.s32.totalorder %s20, 0
      %p110 = por %p108, %p109
      %s111 = ssub.s32 %s14, %s21
      %p112 = scmp.eq.s32.totalorder %s111, 0
      %s114 = sadd.s32 %s113, 1
      %s115 = scalar_select %p112, %s113, %s114
      %p118 = pneg %p112
      %p119 = scmp.eq.s32.totalorder %s14, 1
      %p120 = por %p118, %p119
      %p121 = scmp.ne.s32.totalorder %s113, %s116
      %p122 = scmp.eq.s32.totalorder %s14, 0
      %p123 = por %p121, %p122
      %p124 = scmp.ne.s32.totalorder %s113, %s116
      %p125 = scmp.eq.s32.totalorder %s19, 1
      %p126 = por %p124, %p125
      %p127 = scmp.ne.s32.totalorder %s116, %s117
      %p128 = scmp.eq.s32.totalorder %s19, 0
      %p129 = por %p127, %p128
      %p130 = scmp.ne.s32.totalorder %s116, %s117
      %p131 = scmp.eq.s32.totalorder %s20, 1
      %p132 = por %p130, %p131
      %p134 = scmp.ne.s32.totalorder %s117, %s133
      %p135 = scmp.eq.s32.totalorder %s20, 0
      %p136 = por %p134, %p135
      %p137 = scmp.le.s32.totalorder 1, %s14
      %p138 = scmp.lt.s32.totalorder %s14, 3
      %p139 = pnand %p137, %p138
      %p140 = pneg %p139
      // Predicated region
      $region9: #{tpu_custom_call.1} parent=5 // pred_check
        _
      $region10: #{tpu_custom_call.1} parent=5 // pred_check_branch
        %142 = sbr.rel (%p139) target = $region12
      $region11: #{tpu_custom_call.1} parent=5 // pred_region
        %s143 = ssub.s32 %s14, 1
        // Predicated region
        $region13: #{tpu_custom_call.1} parent=11 // pred_check
          %p144 = pneg %p61
        $region14: #{tpu_custom_call.1} parent=11 // pred_check_branch
          %146 = sbr.rel (%p144) target = $region16
        $region15: #{tpu_custom_call.1} parent=11 // pred_region
          %148 = vsyncadd [#allocation3], 0
          %s149 = sshll.u32 %s1, 4
          %s150 = int_to_ptr.hbm [resolvable:$true] %s149
          %s151 = sshll.u32 [#allocation2], 4
          %s152 = int_to_ptr.vmem [resolvable:$true] %s151
          %157 = dma.hbm_to_vmem [thread:$0]  %s150, 2048, %s152, [#allocation3], 128, 128, 8
        $region16: #{tpu_custom_call.1} parent=11 // pred_fallthru
          _
        // Predicated region
        $region17: #{tpu_custom_call.1} parent=11 // pred_check
          %p158 = pneg %p82
        $region18: #{tpu_custom_call.1} parent=11 // pred_check_branch
          %160 = sbr.rel (%p158) target = $region20
        $region19: #{tpu_custom_call.1} parent=11 // pred_region
          _
        $region20: #{tpu_custom_call.1} parent=11 // pred_fallthru
          _
        // Predicated region
        $region21: #{tpu_custom_call.1} parent=11 // pred_check
          %p161 = pneg %p103
        $region22: #{tpu_custom_call.1} parent=11 // pred_check_branch
          %163 = sbr.rel (%p161) target = $region24
        $region23: #{tpu_custom_call.1} parent=11 // pred_region
          _
        $region24: #{tpu_custom_call.1} parent=11 // pred_fallthru
          _
      $region12: #{tpu_custom_call.1} parent=5 // pred_fallthru
        _
      %p164 = scmp.lt.s32.totalorder %s14, 2
      // Predicated region
      $region25: #{tpu_custom_call.1} parent=5 // pred_check
        %p165 = pneg %p164
      $region26: #{tpu_custom_call.1} parent=5 // pred_check_branch
        %167 = sbr.rel (%p165) target = $region28
      $region27: #{tpu_custom_call.1} parent=5 // pred_region
        // Predicated region
        $region29: #{tpu_custom_call.1} parent=27 // pred_check
          %p168 = pneg %p34
        $region30: #{tpu_custom_call.1} parent=27 // pred_check_branch
          %170 = sbr.rel (%p168) target = $region32
        $region31: #{tpu_custom_call.1} parent=27 // pred_region
          %p171 = scmp.lt.s32.totalorder %s14, 1
          %s172 = scalar_select %p171, %s14, 1
          %s173 = scalar_lea.vmem %s0, %s172
        $region32: #{tpu_custom_call.1} parent=27 // pred_fallthru
          _
      $region28: #{tpu_custom_call.1} parent=5 // pred_fallthru
        _
      %p174 = scmp.le.s32.totalorder 1, %s14
      %p175 = scmp.lt.s32.totalorder %s14, 3
      %p176 = pnand %p174, %p175
      %p177 = pneg %p176
      // Predicated region
      $region33: #{tpu_custom_call.1} parent=5 // pred_check
        _
      $region34: #{tpu_custom_call.1} parent=5 // pred_check_branch
        %179 = sbr.rel (%p176) target = $region36
      $region35: #{tpu_custom_call.1} parent=5 // pred_region
        %s180 = ssub.s32 %s14, 1
        // Predicated region
        $region37: #{tpu_custom_call.1} parent=35 // pred_check
          %p181 = pneg %p61
        $region38: #{tpu_custom_call.1} parent=35 // pred_check_branch
          %183 = sbr.rel (%p181) target = $region40
        $region39: #{tpu_custom_call.1} parent=35 // pred_region
          %185 = dma.done [#allocation3], 2048
        $region40: #{tpu_custom_call.1} parent=35 // pred_fallthru
          _
        %p186 = scmp.lt.s32.totalorder %s19, 1
        %s187 = scalar_select %p186, %s19, 1
        %s188 = scalar_lea.vmem %s0, %s187
        %p189 = pneg %p40
        %p190 = pneg %p37
        %p191 = pneg %p61
        %p192 = pneg %p58
        %p193 = pneg %p82
        %p194 = pneg %p79
        %p195 = pneg %p103
        %p196 = pneg %p100
        %p197 = pneg %p129
        %p198 = pneg %p126
        %s199 = sand.u32 %s116, 1
        %s200 = scalar_lea.sflag [#allocation4], %s199
        %s201 = sand.u32 %s116, 1
        %s202 = smul.addr %s201, 32
        %s203 = scalar_lea.vmem [#allocation5], %s202
        %p204 = scmp.lt.s32.totalorder %s19, 1
        %s205 = scalar_select %p204, %s19, 1
        %s206 = scalar_lea.vmem %s0, %s205
        %v207 = vld [vmem:[%s206] sm:$0x1]
        %v208 = vld [vmem:[%s2] sm:$0xff]
        %v209 = vld [vmem:[%s2 + $0x8] sm:$0xff]
        %v210 = vld [vmem:[%s2 + $0x10] sm:$0xff]
        %v211 = vld [vmem:[%s2 + $0x18] sm:$0xff]
        %213 = vset.pattern.permute.xlu0 0
        %214 = vperm.xlu0 %213, %v208
        %v215 = vpop.permute.xlu0 %214
        %218 = vset.pattern.permute.xlu0 0
        %219 = vperm.xlu0 %218, %v209
        %v220 = vpop.permute.xlu0 %219
        %223 = vset.pattern.permute.xlu0 0
        %224 = vperm.xlu0 %223, %v210
        %v225 = vpop.permute.xlu0 %224
        %228 = vset.pattern.permute.xlu0 0
        %229 = vperm.xlu0 %228, %v211
        %v230 = vpop.permute.xlu0 %229
        %v233 = vperm.slane %v207, 0
        %v235 = vmul.f32 %v215, %v233
        %v236 = vmul.f32 %v220, %v233
        %v237 = vmul.f32 %v225, %v233
        %v238 = vmul.f32 %v230, %v233
        %v239 = vld [vmem:[#allocation2] sm:$0xff]
        %v240 = vld [vmem:[#allocation2 + $0x8] sm:$0xff]
        %v241 = vld [vmem:[#allocation2 + $0x10] sm:$0xff]
        %v242 = vld [vmem:[#allocation2 + $0x18] sm:$0xff]
        %v243 = vld [vmem:[#allocation2 + $0x20] sm:$0xff]
        %v244 = vld [vmem:[#allocation2 + $0x28] sm:$0xff]
        %v245 = vld [vmem:[#allocation2 + $0x30] sm:$0xff]
        %v246 = vld [vmem:[#allocation2 + $0x38] sm:$0xff]
        %v247 = vld [vmem:[#allocation2 + $0x40] sm:$0xff]
        %v248 = vld [vmem:[#allocation2 + $0x48] sm:$0xff]
        %v249 = vld [vmem:[#allocation2 + $0x50] sm:$0xff]
        %v250 = vld [vmem:[#allocation2 + $0x58] sm:$0xff]
        %v251 = vld [vmem:[#allocation2 + $0x60] sm:$0xff]
        %v252 = vld [vmem:[#allocation2 + $0x68] sm:$0xff]
        %v253 = vld [vmem:[#allocation2 + $0x70] sm:$0xff]
        %v254 = vld [vmem:[#allocation2 + $0x78] sm:$0xff]
        %255 = vmatpush.msra.mxu0 %v254
        %256 = vmatpush.msra.mxu0 %v253
        %257 = vmatpush.msra.mxu0 %v252
        %258 = vmatpush.msra.mxu0 %v251
        %259 = vmatpush.msra.mxu0 %v250
        %260 = vmatpush.msra.mxu0 %v249
        %261 = vmatpush.msra.mxu0 %v248
        %262 = vmatpush.msra.mxu0 %v247
        %263 = vmatpush.msra.mxu0 %v246
        %264 = vmatpush.msra.mxu0 %v245
        %265 = vmatpush.msra.mxu0 %v244
        %266 = vmatpush.msra.mxu0 %v243
        %267 = vmatpush.msra.mxu0 %v242
        %268 = vmatpush.msra.mxu0 %v241
        %269 = vmatpush.msra.mxu0 %v240
        %270 = vmatpush.msra.mxu0 %v239
        %271 = vmatmul.f32.gmra.mxu0 %v235
        %v272 = vpop.f32.mrf.mxu0
        %v273 = vadd.f32 0.0, %v272
        %274 = vmatmul.f32.gmra.mxu0 %v236
        %v275 = vpop.f32.mrf.mxu0
        %v276 = vadd.f32 0.0, %v275
        %277 = vmatmul.f32.gmra.mxu0 %v237
        %v278 = vpop.f32.mrf.mxu0
        %v279 = vadd.f32 0.0, %v278
        %280 = vmatmul.f32.gmra.mxu0 %v238
        %v281 = vpop.f32.mrf.mxu0
        %v282 = vadd.f32 0.0, %v281
        %283 = vdwg.mxu0
        %v284 = vadd.f32 %v235, %v273
        %v285 = vadd.f32 %v236, %v276
        %v286 = vadd.f32 %v237, %v279
        %v287 = vadd.f32 %v238, %v282
        %288 = vmatpush.msra.mxu0 %v254
        %289 = vmatpush.msra.mxu0 %v253
        %290 = vmatpush.msra.mxu0 %v252
        %291 = vmatpush.msra.mxu0 %v251
        %292 = vmatpush.msra.mxu0 %v250
        %293 = vmatpush.msra.mxu0 %v249
        %294 = vmatpush.msra.mxu0 %v248
        %295 = vmatpush.msra.mxu0 %v247
        %296 = vmatpush.msra.mxu0 %v246
        %297 = vmatpush.msra.mxu0 %v245
        %298 = vmatpush.msra.mxu0 %v244
        %299 = vmatpush.msra.mxu0 %v243
        %300 = vmatpush.msra.mxu0 %v242
        %301 = vmatpush.msra.mxu0 %v241
        %302 = vmatpush.msra.mxu0 %v240
        %303 = vmatpush.msra.mxu0 %v239
        %304 = vmatmul.f32.gmra.mxu0 %v273
        %v305 = vpop.f32.mrf.mxu0
        %v306 = vadd.f32 0.0, %v305
        %307 = vmatmul.f32.gmra.mxu0 %v276
        %v308 = vpop.f32.mrf.mxu0
        %v309 = vadd.f32 0.0, %v308
        %310 = vmatmul.f32.gmra.mxu0 %v279
        %v311 = vpop.f32.mrf.mxu0
        %v312 = vadd.f32 0.0, %v311
        %313 = vmatmul.f32.gmra.mxu0 %v282
        %v314 = vpop.f32.mrf.mxu0
        %v315 = vadd.f32 0.0, %v314
        %316 = vdwg.mxu0
        %v317 = vadd.f32 %v284, %v306
        %v318 = vadd.f32 %v285, %v309
        %v319 = vadd.f32 %v286, %v312
        %v320 = vadd.f32 %v287, %v315
        %v321 = vld [vmem:[%s3] sm:$0xff]
        %v322 = vld [vmem:[%s3 + $0x8] sm:$0xff]
        %v323 = vld [vmem:[%s3 + $0x10] sm:$0xff]
        %v324 = vld [vmem:[%s3 + $0x18] sm:$0xff]
        %326 = vset.pattern.permute.xlu0 0
        %327 = vperm.xlu0 %326, %v321
        %v328 = vpop.permute.xlu0 %327
        %331 = vset.pattern.permute.xlu0 0
        %332 = vperm.xlu0 %331, %v322
        %v333 = vpop.permute.xlu0 %332
        %336 = vset.pattern.permute.xlu0 0
        %337 = vperm.xlu0 %336, %v323
        %v338 = vpop.permute.xlu0 %337
        %341 = vset.pattern.permute.xlu0 0
        %342 = vperm.xlu0 %341, %v324
        %v343 = vpop.permute.xlu0 %342
        %v345 = vadd.f32 %v317, %v328
        %v346 = vadd.f32 %v318, %v333
        %v347 = vadd.f32 %v319, %v338
        %v348 = vadd.f32 %v320, %v343
        %349 = vst [vmem:[%s203] sm:$0xff] %v345
        %350 = vst [vmem:[%s203 + $0x8] sm:$0xff] %v346
        %351 = vst [vmem:[%s203 + $0x10] sm:$0xff] %v347
        %352 = vst [vmem:[%s203 + $0x18] sm:$0xff] %v348
        %s353 = sand.u32 %s116, 1
        %s354 = scalar_lea.sflag [#allocation4], %s353
        %s355 = sand.u32 %s116, 1
        %s356 = smul.addr %s355, 32
        %s357 = scalar_lea.vmem [#allocation5], %s356
        // Predicated region
        $region41: #{tpu_custom_call.1} parent=35 // pred_check
          %p358 = pneg %p126
        $region42: #{tpu_custom_call.1} parent=35 // pred_check_branch
          %360 = sbr.rel (%p358) target = $region44
        $region43: #{tpu_custom_call.1} parent=35 // pred_region
          %362 = vsyncadd %s354, 0
          %s363 = smul.addr %s19, 4
          %s364 = smul.addr %s363, 8
          %s365 = scalar_lea.hbm %s4, %s364
          %s366 = sshll.u32 %s357, 4
          %s367 = int_to_ptr.vmem [resolvable:$true] %s366
          %s368 = sshll.u32 %s365, 4
          %s369 = int_to_ptr.hbm [resolvable:$true] %s368
          %374 = dma.vmem_to_hbm [thread:$0]  %s367, 512, %s369, %s354, 128, 128, 8
        $region44: #{tpu_custom_call.1} parent=35 // pred_fallthru
          _
      $region36: #{tpu_custom_call.1} parent=5 // pred_fallthru
        _
      %p375 = scmp.le.s32.totalorder 2, %s14
      // Predicated region
      $region45: #{tpu_custom_call.1} parent=5 // pred_check
        %p376 = pneg %p375
      $region46: #{tpu_custom_call.1} parent=5 // pred_check_branch
        %378 = sbr.rel (%p376) target = $region48
      $region47: #{tpu_custom_call.1} parent=5 // pred_region
        %s379 = ssub.s32 %s14, 2
        // Predicated region
        $region49: #{tpu_custom_call.1} parent=47 // pred_check
          %p380 = pneg %p132
        $region50: #{tpu_custom_call.1} parent=47 // pred_check_branch
          %382 = sbr.rel (%p380) target = $region52
        $region51: #{tpu_custom_call.1} parent=47 // pred_region
          %s383 = sand.u32 %s117, 1
          %s384 = scalar_lea.sflag [#allocation4], %s383
          %s385 = sand.u32 %s117, 1
          %s386 = smul.addr %s385, 32
          %s387 = scalar_lea.vmem [#allocation5], %s386
          %389 = dma.done %s384, 512
        $region52: #{tpu_custom_call.1} parent=47 // pred_fallthru
          _
      $region48: #{tpu_custom_call.1} parent=5 // pred_fallthru
        _
    $region6: #{tpu_custom_call.1} parent=1 // loop_footer
      %s18 = sadd.s32 1, %s14
    $region7: #{tpu_custom_call.1} parent=1 // loop_footer_branch
      %13 = sbr.rel target = $region3
    $region8: #{tpu_custom_call.1} parent=1 // loop_exit
      _
    %390 = vsyncpa [#allocation3], 1
    %s391 = scalar_lea.sflag [#allocation3], 1
    %392 = vsyncpa %s391, 1
    %393 = vsyncpa [#allocation4], 1
    %s394 = scalar_lea.sflag [#allocation4], 1
    %395 = vsyncpa %s394, 1

</llo_original>
